<compile_context>
chip_gen: v7x
topology: tpu7x:2x2x1
jax: 0.10.0
libtpu: 0.0.40
codegen_flags: <defaults>
</compile_context>

<pallas_src>
import math
from functools import partial

import jax
import jax.numpy as jnp
from jax.experimental import pallas as pl
from jax.experimental.pallas import tpu as pltpu


def _round_up(n, m):
    return ((n + m - 1) // m) * m


def actor_kernel(x_ref, w1_ref, b1_ref, w2_ref, b2_ref, w3_ref, b3_ref, o_ref):
    """One batch tile.

    x_ref : (S, TB)   bf16      w1_ref: (16, S)  bf16    b1_ref: (16, 1) f32
    w2_ref: (8, 16)   bf16      b2_ref: (8, 1)   f32
    w3_ref: (8, 1)    f32       b3_ref: (1, 1)   f32
    o_ref : (1, TB)   f32
    """
    x = x_ref[...]                                                    # (S, TB) bf16
    # Layer 1: (16,S)@(S,TB) -> (16,TB); bf16 operands, f32 MXU accumulation.
    h1 = jnp.dot(w1_ref[...], x, preferred_element_type=jnp.float32) + b1_ref[...]
    h1 = jnp.maximum(h1, 0.0)                                         # ReLU (VPU)
    # Layer 2: (8,16)@(16,TB) -> (8,TB)
    h2 = jnp.dot(w2_ref[...], h1.astype(jnp.bfloat16),
                 preferred_element_type=jnp.float32) + b2_ref[...]
    h2 = jnp.maximum(h2, 0.0)                                         # ReLU (VPU)
    # Layer 3 (8 -> 1): kept off the MXU.  VPU broadcast-multiply + sublane
    # (XLU) reduce — those slots are idle, so this shortens the serial
    # MXU-dependent chain for free.  Output row is lane-dense -> unmasked vst.
    o_ref[...] = jnp.sum(w3_ref[...] * h2, axis=0, keepdims=True) + b3_ref[...]


@partial(jax.jit, static_argnames=("tile_b",))
def actor_forward(x, params, *, tile_b=512):
    """x: (B, state_dim) float32  ->  (B, 1) float32 (matches the torch module)."""
    w1, b1, w2, b2, w3t, b3 = params
    B, S = x.shape

    # Lane-aligned batch tile (multiple of 128); pad the batch so every grid
    # step sees a full, unmasked block.  Padded lanes are sliced off afterwards.
    tb = min(tile_b, _round_up(B, 128))
    b_pad = _round_up(B, tb)

    # Wrapper-side layout plumbing: batch onto the lane axis + bf16 cast for
    # the MXU (halves the x DMA traffic into the kernel).
    xt = jnp.pad(x.T.astype(jnp.bfloat16), ((0, 0), (0, b_pad - B)))  # (S, b_pad)

    out_t = pl.pallas_call(
        actor_kernel,
        out_shape=jax.ShapeDtypeStruct((1, b_pad), jnp.float32),
        grid=(b_pad // tb,),
        in_specs=[
            # x: one lane-tile of the batch per grid step (double-buffered).
            pl.BlockSpec((S, tb), lambda i: (0, i)),
            # Weights / biases: grid-invariant -> DMA'd into VMEM once, reused
            # across every batch tile.
            pl.BlockSpec(w1.shape, lambda i: (0, 0)),
            pl.BlockSpec(b1.shape, lambda i: (0, 0)),
            pl.BlockSpec(w2.shape, lambda i: (0, 0)),
            pl.BlockSpec(b2.shape, lambda i: (0, 0)),
            pl.BlockSpec(w3t.shape, lambda i: (0, 0)),
            pl.BlockSpec(b3.shape, lambda i: (0, 0)),
        ],
        # Lane-dense output tile: full-width unmasked stores.
        out_specs=pl.BlockSpec((1, tb), lambda i: (0, i)),
        compiler_params=pltpu.CompilerParams(
            dimension_semantics=("parallel",)),   # shard batch tiles across TCs (v7x)
    )(xt, w1, b1, w2, b2, w3t, b3)

    return out_t[:, :B].T                         # back to the module's (B, 1)


# ----------------------------------------------------------------------------
# Parameter init (matches torch: xavier_uniform_ weights, bias filled with 0.01)
# ----------------------------------------------------------------------------
def xavier_uniform(key, fan_out, fan_in):
    limit = math.sqrt(6.0 / (fan_in + fan_out))
    # Torch Linear weight layout: (out_features, in_features) — exactly what
    # the transposed kernel consumes directly.
    return jax.random.uniform(key, (fan_out, fan_in), jnp.float32, -limit, limit)


def init_actor_params(key, state_dim):
    k1, k2, k3 = jax.random.split(key, 3)
    w1 = xavier_uniform(k1, 16, state_dim).astype(jnp.bfloat16)   # (16, S)  bf16 (MXU)
    b1 = jnp.full((16, 1), 0.01, jnp.float32)
    w2 = xavier_uniform(k2, 8, 16).astype(jnp.bfloat16)           # (8, 16)  bf16 (MXU)
    b2 = jnp.full((8, 1), 0.01, jnp.float32)
    w3t = xavier_uniform(k3, 1, 8).T                              # (8, 1)   f32  (VPU layer)
    b3 = jnp.full((1, 1), 0.01, jnp.float32)
    return (w1, b1, w2, b2, w3t, b3)


def reference_forward(x, params, *, match_kernel_dtypes=True):
    """Pure-JAX reference.  match_kernel_dtypes=True mirrors the kernel's
    bf16-operand / f32-accumulate numerics; False is the pure-f32 torch math."""
    w1, b1, w2, b2, w3t, b3 = params
    if match_kernel_dtypes:
        cast = lambda a: a.astype(jnp.bfloat16)
    else:
        cast = lambda a: a.astype(jnp.float32)
    h1 = jnp.maximum(
        jnp.dot(cast(x), cast(w1).T, preferred_element_type=jnp.float32) + b1.T, 0.0)
    h2 = jnp.maximum(
        jnp.dot(cast(h1), cast(w2).T, preferred_element_type=jnp.float32) + b2.T, 0.0)
    return h2 @ w3t.astype(jnp.float32) + b3


if __name__ == "__main__":
    key = jax.random.PRNGKey(0)
    kp, kx, kx2 = jax.random.split(key, 3)

    state_dim = 4
    batch = 8

    params = init_actor_params(kp, state_dim)
    # The PyTorch module takes a numpy array and casts to float; here we build
    # a float32 input directly.
    x = jax.random.normal(kx, (batch, state_dim), jnp.float32)

    out = jax.block_until_ready(actor_forward(x, params))
    assert out.shape == (batch, 1)

    # Tight check against a reference with the kernel's exact numerics.
    ref = reference_forward(x, params, match_kernel_dtypes=True)
    assert jnp.allclose(out, ref, atol=1e-3, rtol=1e-3)
    # Module-level fidelity check against pure-f32 PyTorch semantics
    # (bf16 MXU operands introduce <~1% error for this 3-layer MLP).
    ref32 = reference_forward(x, params, match_kernel_dtypes=False)
    assert jnp.allclose(out, ref32, atol=5e-2, rtol=5e-2)

    # Exercise the multi-tile pipelined / megacore-parallel path with a batch
    # that is not a multiple of the tile size.
    x_big = jax.random.normal(kx2, (1000, state_dim), jnp.float32)
    out_big = jax.block_until_ready(actor_forward(x_big, params, tile_b=256))
    ref_big = reference_forward(x_big, params, match_kernel_dtypes=True)
    assert out_big.shape == (1000, 1)
    assert jnp.allclose(out_big, ref_big, atol=1e-3, rtol=1e-3)

    # TODO(synk): at single-env-step batch sizes (~8) this should be fused into
    # the surrounding rollout/critic kernel; a standalone dispatch is dominated
    # by launch overhead no matter how the kernel is tuned.
    print("KERNEL_OK")
</pallas_src>

<mosaic_0001>
module attributes {stable_mosaic.version = 11 : i64} {
  func.func @actor_kernel(%arg0: i32, %arg1: memref<4x128xbf16, #tpu.memory_space<vmem>>, %arg2: memref<16x4xbf16, #tpu.memory_space<vmem>>, %arg3: memref<16x1xf32, #tpu.memory_space<vmem>>, %arg4: memref<8x16xbf16, #tpu.memory_space<vmem>>, %arg5: memref<8x1xf32, #tpu.memory_space<vmem>>, %arg6: memref<8x1xf32, #tpu.memory_space<vmem>>, %arg7: memref<1x1xf32, #tpu.memory_space<vmem>>, %arg8: memref<1x128xf32, #tpu.memory_space<vmem>>) attributes {dimension_semantics = [#tpu.dimension_semantics<parallel>], iteration_bounds = array<i64: 1>, scalar_prefetch = 0 : i64, scratch_operands = 0 : i64, tpu.core_type = #tpu.core_type<tc>, window_params = [{transform_indices = @transform_0, window_bounds = array<i64: 4, 128>}, {pipeline_mode = #tpu.pipeline_mode<synchronous>, transform_indices = @transform_1, window_bounds = array<i64: 16, 4>}, {pipeline_mode = #tpu.pipeline_mode<synchronous>, transform_indices = @transform_2, window_bounds = array<i64: 16, 1>}, {pipeline_mode = #tpu.pipeline_mode<synchronous>, transform_indices = @transform_3, window_bounds = array<i64: 8, 16>}, {pipeline_mode = #tpu.pipeline_mode<synchronous>, transform_indices = @transform_4, window_bounds = array<i64: 8, 1>}, {pipeline_mode = #tpu.pipeline_mode<synchronous>, transform_indices = @transform_5, window_bounds = array<i64: 8, 1>}, {pipeline_mode = #tpu.pipeline_mode<synchronous>, transform_indices = @transform_6, window_bounds = array<i64: 1, 1>}, {transform_indices = @transform_7, window_bounds = array<i64: 1, 128>}]} {
    %c0 = arith.constant 0 : index
    %c0_0 = arith.constant 0 : index
    %0 = vector.load %arg1[%c0, %c0_0] : memref<4x128xbf16, #tpu.memory_space<vmem>>, vector<4x128xbf16>
    %c0_1 = arith.constant 0 : index
    %c0_2 = arith.constant 0 : index
    %1 = vector.load %arg2[%c0_1, %c0_2] : memref<16x4xbf16, #tpu.memory_space<vmem>>, vector<16x4xbf16>
    %cst = arith.constant dense<0.000000e+00> : vector<16x128xf32>
    %2 = tpu.matmul %1, %0, %cst {dimension_numbers = #tpu.dot_dimension_numbers<[1], [0], [0], [1], [0, 0, 1, 1], [], []>} : vector<16x4xbf16>, vector<4x128xbf16>, vector<16x128xf32> -> vector<16x128xf32>
    %c0_3 = arith.constant 0 : index
    %c0_4 = arith.constant 0 : index
    %3 = vector.load %arg3[%c0_3, %c0_4] : memref<16x1xf32, #tpu.memory_space<vmem>>, vector<16x1xf32>
    %4 = vector.broadcast %3 : vector<16x1xf32> to vector<16x128xf32>
    %5 = arith.addf %2, %4 : vector<16x128xf32>
    %cst_5 = arith.constant 0.000000e+00 : f32
    %6 = vector.broadcast %cst_5 : f32 to vector<16x128xf32>
    %7 = arith.maximumf %5, %6 : vector<16x128xf32>
    %c0_6 = arith.constant 0 : index
    %c0_7 = arith.constant 0 : index
    %8 = vector.load %arg4[%c0_6, %c0_7] : memref<8x16xbf16, #tpu.memory_space<vmem>>, vector<8x16xbf16>
    %9 = arith.truncf %7 : vector<16x128xf32> to vector<16x128xbf16>
    %cst_8 = arith.constant dense<0.000000e+00> : vector<8x128xf32>
    %10 = tpu.matmul %8, %9, %cst_8 {dimension_numbers = #tpu.dot_dimension_numbers<[1], [0], [0], [1], [0, 0, 1, 1], [], []>} : vector<8x16xbf16>, vector<16x128xbf16>, vector<8x128xf32> -> vector<8x128xf32>
    %c0_9 = arith.constant 0 : index
    %c0_10 = arith.constant 0 : index
    %11 = vector.load %arg5[%c0_9, %c0_10] : memref<8x1xf32, #tpu.memory_space<vmem>>, vector<8x1xf32>
    %12 = vector.broadcast %11 : vector<8x1xf32> to vector<8x128xf32>
    %13 = arith.addf %10, %12 : vector<8x128xf32>
    %cst_11 = arith.constant 0.000000e+00 : f32
    %14 = vector.broadcast %cst_11 : f32 to vector<8x128xf32>
    %15 = arith.maximumf %13, %14 : vector<8x128xf32>
    %c0_12 = arith.constant 0 : index
    %c0_13 = arith.constant 0 : index
    %16 = vector.load %arg6[%c0_12, %c0_13] : memref<8x1xf32, #tpu.memory_space<vmem>>, vector<8x1xf32>
    %17 = vector.broadcast %16 : vector<8x1xf32> to vector<8x128xf32>
    %18 = arith.mulf %17, %15 : vector<8x128xf32>
    %cst_14 = arith.constant dense<0.000000e+00> : vector<128xf32>
    %19 = vector.multi_reduction <add>, %18, %cst_14 [0] : vector<8x128xf32> to vector<128xf32>
    %20 = vector.shape_cast %19 : vector<128xf32> to vector<1x128xf32>
    %c0_15 = arith.constant 0 : index
    %c0_16 = arith.constant 0 : index
    %21 = vector.load %arg7[%c0_15, %c0_16] : memref<1x1xf32, #tpu.memory_space<vmem>>, vector<1x1xf32>
    %22 = vector.broadcast %21 : vector<1x1xf32> to vector<1x128xf32>
    %23 = arith.addf %20, %22 : vector<1x128xf32>
    %c0_17 = arith.constant 0 : index
    %c0_18 = arith.constant 0 : index
    %24 = vector.load %arg8[%c0_17, %c0_18] : memref<1x128xf32, #tpu.memory_space<vmem>>, vector<1x128xf32>
    tpu.vector_store %arg8[%c0_17, %c0_18], %23 {strides = array<i32>} : memref<1x128xf32, #tpu.memory_space<vmem>>, vector<1x128xf32>,
    return
  }
  func.func @transform_0(%arg0: i32) -> (i32, i32) {
    %c0_i32 = arith.constant 0 : i32
    %c0_i32_0 = arith.constant 0 : i32
    return %c0_i32, %arg0 : i32, i32
  }
  func.func @transform_1(%arg0: i32) -> (i32, i32) {
    %c0_i32 = arith.constant 0 : i32
    %c0_i32_0 = arith.constant 0 : i32
    %c0_i32_1 = arith.constant 0 : i32
    return %c0_i32, %c0_i32_0 : i32, i32
  }
  func.func @transform_2(%arg0: i32) -> (i32, i32) {
    %c0_i32 = arith.constant 0 : i32
    %c0_i32_0 = arith.constant 0 : i32
    %c0_i32_1 = arith.constant 0 : i32
    return %c0_i32, %c0_i32_0 : i32, i32
  }
  func.func @transform_3(%arg0: i32) -> (i32, i32) {
    %c0_i32 = arith.constant 0 : i32
    %c0_i32_0 = arith.constant 0 : i32
    %c0_i32_1 = arith.constant 0 : i32
    return %c0_i32, %c0_i32_0 : i32, i32
  }
  func.func @transform_4(%arg0: i32) -> (i32, i32) {
    %c0_i32 = arith.constant 0 : i32
    %c0_i32_0 = arith.constant 0 : i32
    %c0_i32_1 = arith.constant 0 : i32
    return %c0_i32, %c0_i32_0 : i32, i32
  }
  func.func @transform_5(%arg0: i32) -> (i32, i32) {
    %c0_i32 = arith.constant 0 : i32
    %c0_i32_0 = arith.constant 0 : i32
    %c0_i32_1 = arith.constant 0 : i32
    return %c0_i32, %c0_i32_0 : i32, i32
  }
  func.func @transform_6(%arg0: i32) -> (i32, i32) {
    %c0_i32 = arith.constant 0 : i32
    %c0_i32_0 = arith.constant 0 : i32
    %c0_i32_1 = arith.constant 0 : i32
    return %c0_i32, %c0_i32_0 : i32, i32
  }
  func.func @transform_7(%arg0: i32) -> (i32, i32) {
    %c0_i32 = arith.constant 0 : i32
    %c0_i32_0 = arith.constant 0 : i32
    return %c0_i32, %arg0 : i32, i32
  }
}

</mosaic_0001>

<llo_original>
// kernel: actor_forward.1
$region0: #{actor_forward.1}
  #allocation0 [shape = 'u32[]', space=smem, size = 0x4, offset = 0x4, fixed_abs, tag = 'smem constant byte address 0x4 - core index']
  #allocation1 [shape = 'u32[144,128]{1,0:T(1,128)}', space=vmem, size = 0x12000, scoped, tag = 'internal scratch']
  #allocation2 [shape = 'f32[1,1]{1,0:T(1,128)S(1)}', space=vmem, size = 0x200, scoped, tag = 'scoped memory for actor_forward.1']
  %s0 = inlined_call_operand.vmem [shape: bf16[4,128], index: 0, kind: input, shape index: {}]
  %s1 = inlined_call_operand.vmem [shape: bf16[16,4], index: 1, kind: input, shape index: {}]
  %s2 = inlined_call_operand.vmem [shape: f32[16,1], index: 2, kind: input, shape index: {}]
  %s3 = inlined_call_operand.vmem [shape: bf16[8,16], index: 3, kind: input, shape index: {}]
  %s4 = inlined_call_operand.vmem [shape: f32[8,1], index: 4, kind: input, shape index: {}]
  %s5 = inlined_call_operand.vmem [shape: f32[8,1], index: 5, kind: input, shape index: {}]
  %s6 = inlined_call_operand.<no memory space> [shape: f32[1,1], index: 6, kind: input, shape index: {}]
  %s7 = inlined_call_operand.vmem [shape: f32[1,128], index: 7, kind: output, shape index: {}]
  %s8 = sld [smem:[#allocation0]]
  $region38: #{actor_forward.1} parent=0
    _
  %s10 = ssub.s32 1, %s8
  %s11 = scalar_select 0, %s10, %s8
  %v12 = vstv %s6
  %13 = vst [vmem:[#allocation2] sm:$0x1] %v12
  // Predicated region
  $region2: #{actor_forward.1} parent=0 // pred_check
    _
  $region3: #{actor_forward.1} parent=0 // pred_check_branch
    %15 = sbr.rel (0) target = $region5
  $region4: #{actor_forward.1} parent=0 // pred_region
    _
  $region5: #{actor_forward.1} parent=0 // pred_fallthru
    _
  // Predicated region
  $region6: #{actor_forward.1} parent=0 // pred_check
    _
  $region7: #{actor_forward.1} parent=0 // pred_check_branch
    %17 = sbr.rel (0) target = $region9
  $region8: #{actor_forward.1} parent=0 // pred_region
    _
  $region9: #{actor_forward.1} parent=0 // pred_fallthru
    _
  // Predicated region
  $region10: #{actor_forward.1} parent=0 // pred_check
    _
  $region11: #{actor_forward.1} parent=0 // pred_check_branch
    %19 = sbr.rel (0) target = $region13
  $region12: #{actor_forward.1} parent=0 // pred_region
    _
  $region13: #{actor_forward.1} parent=0 // pred_fallthru
    _
  // Predicated region
  $region14: #{actor_forward.1} parent=0 // pred_check
    _
  $region15: #{actor_forward.1} parent=0 // pred_check_branch
    %21 = sbr.rel (0) target = $region17
  $region16: #{actor_forward.1} parent=0 // pred_region
    _
  $region17: #{actor_forward.1} parent=0 // pred_fallthru
    _
  // Predicated region
  $region18: #{actor_forward.1} parent=0 // pred_check
    _
  $region19: #{actor_forward.1} parent=0 // pred_check_branch
    %23 = sbr.rel (0) target = $region21
  $region20: #{actor_forward.1} parent=0 // pred_region
    _
  $region21: #{actor_forward.1} parent=0 // pred_fallthru
    _
  // Predicated region
  $region22: #{actor_forward.1} parent=0 // pred_check
    _
  $region23: #{actor_forward.1} parent=0 // pred_check_branch
    %25 = sbr.rel (0) target = $region25
  $region24: #{actor_forward.1} parent=0 // pred_region
    _
  $region25: #{actor_forward.1} parent=0 // pred_fallthru
    _
  // Predicated region
  $region26: #{actor_forward.1} parent=0 // pred_check
    _
  $region27: #{actor_forward.1} parent=0 // pred_check_branch
    %27 = sbr.rel (0) target = $region29
  $region28: #{actor_forward.1} parent=0 // pred_region
    _
  $region29: #{actor_forward.1} parent=0 // pred_fallthru
    _
  %v29 = vld [vmem:[%s0] sm:$0x3]
  %v30 = vld [vmem:[%s1] sm:$0xf]
  %v31 = vld [vmem:[%s1 + $0x4] sm:$0xf]
  %v32 = vld [vmem:[%s2] sm:$0xff]
  %v33 = vld [vmem:[%s2 + $0x8] sm:$0xff]
  %35 = vset.pattern.permute.xlu0 0
  %36 = vperm.xlu0 %35, %v32
  %v37 = vpop.permute.xlu0 %36
  %40 = vset.pattern.permute.xlu0 0
  %41 = vperm.xlu0 %40, %v33
  %v42 = vpop.permute.xlu0 %41
  %v46 = vunpack.c.l.b16 %v30
  %v47 = vunpack.c.l.b16 %v31
  %v48 = vpack.c.b16 %v47, %v46
  %vm49 = vcmask 31744
  %v51 = vsel %vm49, %v48, 0
  %vm53 = vcmask 1041408
  %v55 = vsel %vm53, %v29, 0
  %57 = vmatprep.subr.bf16.mxu0 0
  %58 = vmatpush1.bf16.msra.mxu0 %v55
  %59 = vmatprep.subr.bf16.mxu0 0
  %60 = vmatpush1.bf16.msra.mxu0 0
  %61 = vmatprep.subr.bf16.mxu0 0
  %62 = vmatpush1.bf16.msra.mxu0 0
  %63 = vmatprep.subr.bf16.mxu0 0
  %64 = vmatpush1.bf16.msra.mxu0 0
  %65 = vmatprep.subr.bf16.mxu0 0
  %66 = vmatpush1.bf16.msra.mxu0 0
  %67 = vmatprep.subr.bf16.mxu0 0
  %68 = vmatpush1.bf16.msra.mxu0 0
  %69 = vmatprep.subr.bf16.mxu0 0
  %70 = vmatpush1.bf16.msra.mxu0 0
  %71 = vmatprep.subr.bf16.mxu0 0
  %72 = vmatpush1.bf16.msra.mxu0 0
  %73 = vmatprep.subr.bf16.mxu0 0
  %74 = vmatpush1.bf16.msra.mxu0 0
  %75 = vmatprep.subr.bf16.mxu0 0
  %76 = vmatpush1.bf16.msra.mxu0 0
  %77 = vmatprep.subr.bf16.mxu0 0
  %78 = vmatpush1.bf16.msra.mxu0 0
  %79 = vmatprep.subr.bf16.mxu0 0
  %80 = vmatpush1.bf16.msra.mxu0 0
  %81 = vmatprep.subr.bf16.mxu0 0
  %82 = vmatpush1.bf16.msra.mxu0 0
  %83 = vmatprep.subr.bf16.mxu0 0
  %84 = vmatpush1.bf16.msra.mxu0 0
  %85 = vmatprep.subr.bf16.mxu0 0
  %86 = vmatpush1.bf16.msra.mxu0 0
  %87 = vmatprep.subr.bf16.mxu0 0
  %88 = vmatpush1.bf16.msra.mxu0 0
  %89 = vmatprep.mubr.bf16.mxu0 0
  %90 = vmatmul.mubr.bf16.gmra.mrb[0].mxu0 %v51
  %v91 = vpop.f32.mrb[0].mxu0
  %v92 = vadd.f32 %v37, %v91
  %v93 = vpop.f32.mrb[0].mxu0
  %v94 = vpop.f32.mrb[0].mxu0
  %v95 = vadd.f32 %v42, %v94
  %v96 = vpop.f32.mrb[0].mxu0
  %97 = vdwg.mxu0
  %v98 = vmax.f32 %v92, 0.0
  %v99 = vmax.f32 %v95, 0.0
  %v100 = vld [vmem:[%s3] sm:$0xf]
  %v101 = vpack.c.bf16 %v99, %v98
  %v102 = vld [vmem:[%s4] sm:$0xff]
  %104 = vset.pattern.permute.xlu0 0
  %105 = vperm.xlu0 %104, %v102
  %v106 = vpop.permute.xlu0 %105
  %vm108 = vcmask 130048
  %v110 = vsel %vm108, %v100, 0
  %112 = vmatprep.subr.bf16.mxu0 0
  %113 = vmatpush1.bf16.msra.mxu0 %v101
  %114 = vmatprep.subr.bf16.mxu0 0
  %115 = vmatpush1.bf16.msra.mxu0 0
  %116 = vmatprep.subr.bf16.mxu0 0
  %117 = vmatpush1.bf16.msra.mxu0 0
  %118 = vmatprep.subr.bf16.mxu0 0
  %119 = vmatpush1.bf16.msra.mxu0 0
  %120 = vmatprep.subr.bf16.mxu0 0
  %121 = vmatpush1.bf16.msra.mxu0 0
  %122 = vmatprep.subr.bf16.mxu0 0
  %123 = vmatpush1.bf16.msra.mxu0 0
  %124 = vmatprep.subr.bf16.mxu0 0
  %125 = vmatpush1.bf16.msra.mxu0 0
  %126 = vmatprep.subr.bf16.mxu0 0
  %127 = vmatpush1.bf16.msra.mxu0 0
  %128 = vmatprep.subr.bf16.mxu0 0
  %129 = vmatpush1.bf16.msra.mxu0 0
  %130 = vmatprep.subr.bf16.mxu0 0
  %131 = vmatpush1.bf16.msra.mxu0 0
  %132 = vmatprep.subr.bf16.mxu0 0
  %133 = vmatpush1.bf16.msra.mxu0 0
  %134 = vmatprep.subr.bf16.mxu0 0
  %135 = vmatpush1.bf16.msra.mxu0 0
  %136 = vmatprep.subr.bf16.mxu0 0
  %137 = vmatpush1.bf16.msra.mxu0 0
  %138 = vmatprep.subr.bf16.mxu0 0
  %139 = vmatpush1.bf16.msra.mxu0 0
  %140 = vmatprep.subr.bf16.mxu0 0
  %141 = vmatpush1.bf16.msra.mxu0 0
  %142 = vmatprep.subr.bf16.mxu0 0
  %143 = vmatpush1.bf16.msra.mxu0 0
  %144 = vmatprep.mubr.bf16.mxu0 0
  %145 = vmatmul.mubr.bf16.gmra.mrb[0].mxu0 %v110
  %v146 = vpop.f32.mrb[0].mxu0
  %v147 = vadd.f32 %v106, %v146
  %v148 = vpop.f32.mrb[0].mxu0
  %v149 = vpop.f32.mrb[0].mxu0
  %v150 = vpop.f32.mrb[0].mxu0
  %151 = vdwg.mxu0
  %v152 = vmax.f32 %v147, 0.0
  %v153 = vld [vmem:[%s5] sm:$0xff]
  %155 = vset.pattern.permute.xlu0 0
  %156 = vperm.xlu0 %155, %v153
  %v157 = vpop.permute.xlu0 %156
  %v159 = vmul.f32 %v157, %v152
  %v160 = vrot.slane %v159, 4
  %v161 = vadd.f32 %v159, %v160
  %v162 = vrot.slane %v161, 2
  %v163 = vadd.f32 %v161, %v162
  %v164 = vrot.slane %v163, 1
  %v165 = vadd.f32 %v163, %v164
  %v166 = vld [vmem:[#allocation2] sm:$0x1]
  %168 = vset.pattern.permute.xlu0 0
  %169 = vperm.xlu0 %168, %v166
  %v170 = vpop.permute.xlu0 %169
  %v172 = vlaneseq
  %v173 = vshrl.u32 %v172, 7
  %v174 = vsub.s32 0, %v173
  %v175 = vrot.slane %v170, %v174
  %v176 = vadd.f32 %v165, %v175
  %177 = vst [vmem:[%s7] sm:$0x1] %v176
  // Predicated region
  $region30: #{actor_forward.1} parent=0 // pred_check
    _
  $region31: #{actor_forward.1} parent=0 // pred_check_branch
    %179 = sbr.rel (0) target = $region33
  $region32: #{actor_forward.1} parent=0 // pred_region
    _
  $region33: #{actor_forward.1} parent=0 // pred_fallthru
    _
  // Predicated region
  $region34: #{actor_forward.1} parent=0 // pred_check
    _
  $region35: #{actor_forward.1} parent=0 // pred_check_branch
    %181 = sbr.rel (0) target = $region37
  $region36: #{actor_forward.1} parent=0 // pred_region
    _
  $region37: #{actor_forward.1} parent=0 // pred_fallthru
    _

</llo_original>
